<compile_context>
chip_gen: v5e
topology: v5e:2x2
jax: 0.10.0
libtpu: 0.0.40
codegen_flags: <defaults>
</compile_context>

<pallas_src>
import functools

import numpy as np
import jax
import jax.numpy as jnp
from jax.experimental import pallas as pl
from jax.experimental.pallas import tpu as pltpu

# fp32(2*pi) == 2*fp32(pi) exactly, so multiplying by this single constant is
# bit-identical to the reference's ((x*W) * 2) * pi ordering.
_TWO_PI = np.float32(2.0 * np.pi)


def _round_up(n, m):
    return ((n + m - 1) // m) * m


def _gfp_kernel(x_ref, w_ref, out_ref, *, tb, half, x_resident):
    # x_ref: (B_p, 1) resident  OR  (tb, 1) per-tile, f32
    # w_ref: (1, half) f32 (unscaled W, lane-padded to a multiple of 128)
    # out_ref: (tb, 2*half) f32
    if x_resident:
        row0 = pl.multiple_of(pl.program_id(0) * tb, 8)
        xt = x_ref[pl.ds(row0, tb), :]            # (tb, 1)
    else:
        xt = x_ref[...]                           # (tb, 1)
    # Outer product on the VPU (broadcast multiply), then the 2*pi constant.
    proj = xt * w_ref[...] * _TWO_PI              # (tb, half)
    out_ref[:, :half] = jnp.sin(proj)             # lane-aligned unmasked stores
    out_ref[:, half:] = jnp.cos(proj)


def gaussian_fourier_projection(x, W, *, target_block_bytes=4 << 20,
                                vmem_budget_bytes=24 << 20):
    """x: (B,) timesteps; W: (half,) frozen weights -> (B, 2*half) float32."""
    B = x.shape[0]
    half = W.shape[0]
    half_p = _round_up(max(half, 1), 128)          # lane-dense output stores

    # ---- adaptive batch tile -------------------------------------------
    row_bytes = 4 * 2 * half_p                     # one f32 output row
    tb = _round_up(max(target_block_bytes // row_bytes, 1), 8)
    # v7x-aware cap: up to 3 output buffers must fit the VMEM budget.
    tb = min(tb, max(8, (vmem_budget_bytes // (3 * row_bytes)) // 8 * 8))
    B8 = _round_up(B, 8)
    if B8 >= 16:
        # >= 2 grid steps when the batch allows it (dual-TC split on v7x,
        # input/output pipelining everywhere).
        tb = min(tb, _round_up(-(-B8 // 2), 8))
    tb = max(8, min(tb, B8))
    B_p = _round_up(B8, tb)
    num_steps = B_p // tb

    # x in VMEM is (rows, 1) -> ~64 B/row after (8,128) tiling; keep it fully
    # resident only while that stays trivially small.
    x_resident = (B_p * 64) <= (2 << 20)

    # ---- operands --------------------------------------------------------
    x2d = x.astype(jnp.float32).reshape(B, 1)
    if B_p != B:
        x2d = jnp.pad(x2d, ((0, B_p - B), (0, 0)))
    w = W.astype(jnp.float32)
    if half_p != half:
        w = jnp.pad(w, (0, half_p - half))
    w2d = w.reshape(1, half_p)

    # ---- specs -----------------------------------------------------------
    if x_resident:
        x_spec = pl.BlockSpec((B_p, 1), lambda i: (0, 0))      # resident
    else:
        x_spec = pl.BlockSpec((tb, 1), lambda i: (i, 0))        # streamed
    w_spec = pl.BlockSpec((1, half_p), lambda i: (0, 0))        # resident

    if num_steps >= 4:
        out_spec = pl.BlockSpec((tb, 2 * half_p), lambda i: (i, 0),
                                pipeline_mode=pl.Buffered(3))
        n_out_buf = 3
    else:
        out_spec = pl.BlockSpec((tb, 2 * half_p), lambda i: (i, 0))
        n_out_buf = 2

    # VMEM limit from the actual footprint (+ headroom), v7x-safe (<= 48 MiB).
    out_bytes = 4 * tb * 2 * half_p
    x_bytes = 64 * (B_p if x_resident else tb)    # lane-padded (last dim == 1)
    w_bytes = 4 * 8 * half_p                      # sublane-padded (first dim == 1)
    footprint = n_out_buf * out_bytes + 2 * (x_bytes + w_bytes)
    vmem_limit = int(min(max(footprint + (8 << 20), 16 << 20), 48 << 20))

    cost = pl.CostEstimate(
        flops=2 * B_p * half_p,                   # outer product + 2*pi scale
        transcendentals=2 * B_p * half_p,         # sin + cos
        bytes_accessed=4 * (B_p + half_p + B_p * 2 * half_p),
    )

    kernel = functools.partial(_gfp_kernel, tb=tb, half=half_p,
                               x_resident=x_resident)

    out_p = pl.pallas_call(
        kernel,
        out_shape=jax.ShapeDtypeStruct((B_p, 2 * half_p), jnp.float32),
        grid=(num_steps,),
        in_specs=[x_spec, w_spec],
        out_specs=out_spec,
        compiler_params=pltpu.CompilerParams(
            dimension_semantics=("parallel",),    # dual-TC split on v7x
            vmem_limit_bytes=vmem_limit,
        ),
        cost_estimate=cost,
    )(x2d, w2d)

    # Common fast path (half % 128 == 0): no extra HBM round trip.
    if half_p == half:
        return out_p if B_p == B else out_p[:B]
    # Rare lane-padded fallback: re-stitch sin|cos halves in torch.cat order.
    return jnp.concatenate(
        [out_p[:B, :half], out_p[:B, half_p:half_p + half]], axis=-1)


if __name__ == "__main__":
    key = jax.random.PRNGKey(0)
    kx, kw = jax.random.split(key)

    B = 8
    embed_dim = 256          # -> W has embed_dim // 2 = 128 entries
    scale = 30.0

    # Frozen parameter, mirroring torch.randn(embed_dim // 2) * scale.
    W = jax.random.normal(kw, (embed_dim // 2,), dtype=jnp.float32) * scale
    # Example diffusion timesteps in [0, 1).
    x = jax.random.uniform(kx, (B,), dtype=jnp.float32)

    out = gaussian_fourier_projection(x, W)
    out = jax.block_until_ready(out)

    # Reference, written exactly like the PyTorch forward.
    x_proj = x[:, None] * W[None, :] * 2.0 * np.pi
    ref = jnp.concatenate([jnp.sin(x_proj), jnp.cos(x_proj)], axis=-1)
    assert out.shape == (B, embed_dim), out.shape
    # Arguments reach O(100); Mosaic vs. XLA sin/cos range reduction may differ
    # by a few ulps of the argument, i.e. up to O(1e-4) absolute on the output.
    np.testing.assert_allclose(np.asarray(out), np.asarray(ref),
                               rtol=2e-4, atol=2e-4)

    print("KERNEL_OK")
</pallas_src>

<mosaic_0001>
module attributes {stable_mosaic.version = 11 : i64} {
  func.func @_gfp_kernel(%arg0: i32, %arg1: memref<8x1xf32, #tpu.memory_space<vmem>>, %arg2: memref<1x128xf32, #tpu.memory_space<vmem>>, %arg3: memref<8x256xf32, #tpu.memory_space<vmem>>) attributes {dimension_semantics = [#tpu.dimension_semantics<parallel>], iteration_bounds = array<i64: 1>, scalar_prefetch = 0 : i64, scratch_operands = 0 : i64, tpu.core_type = #tpu.core_type<tc>, window_params = [{pipeline_mode = #tpu.pipeline_mode<synchronous>, transform_indices = @transform_0, window_bounds = array<i64: 8, 1>}, {pipeline_mode = #tpu.pipeline_mode<synchronous>, transform_indices = @transform_1, window_bounds = array<i64: 1, 128>}, {transform_indices = @transform_2, window_bounds = array<i64: 8, 256>}]} {
    %c8_i32 = arith.constant 8 : i32
    %0 = arith.muli %arg0, %c8_i32 : i32
    %1 = tpu.assume_multiple %0, 8 : i32
    %2 = arith.index_cast %1 : i32 to index
    %c0 = arith.constant 0 : index
    %3 = vector.load %arg1[%2, %c0] : memref<8x1xf32, #tpu.memory_space<vmem>>, vector<8x1xf32>
    %c0_0 = arith.constant 0 : index
    %c0_1 = arith.constant 0 : index
    %4 = vector.load %arg2[%c0_0, %c0_1] : memref<1x128xf32, #tpu.memory_space<vmem>>, vector<1x128xf32>
    %5 = vector.broadcast %3 : vector<8x1xf32> to vector<8x128xf32>
    %6 = vector.broadcast %4 : vector<1x128xf32> to vector<8x128xf32>
    %7 = arith.mulf %5, %6 : vector<8x128xf32>
    %cst = arith.constant 6.28318548 : f32
    %8 = vector.broadcast %cst : f32 to vector<8x128xf32>
    %9 = arith.mulf %7, %8 : vector<8x128xf32>
    %10 = math.sin %9 : vector<8x128xf32>
    %c0_2 = arith.constant 0 : index
    %c0_3 = arith.constant 0 : index
    %11 = vector.load %arg3[%c0_2, %c0_3] : memref<8x256xf32, #tpu.memory_space<vmem>>, vector<8x128xf32>
    tpu.vector_store %arg3[%c0_2, %c0_3], %10 {strides = array<i32>} : memref<8x256xf32, #tpu.memory_space<vmem>>, vector<8x128xf32>,
    %12 = math.cos %9 : vector<8x128xf32>
    %c0_4 = arith.constant 0 : index
    %c128 = arith.constant 128 : index
    %13 = vector.load %arg3[%c0_4, %c128] : memref<8x256xf32, #tpu.memory_space<vmem>>, vector<8x128xf32>
    tpu.vector_store %arg3[%c0_4, %c128], %12 {strides = array<i32>} : memref<8x256xf32, #tpu.memory_space<vmem>>, vector<8x128xf32>,
    return
  }
  func.func @transform_0(%arg0: i32) -> (i32, i32) {
    %c0_i32 = arith.constant 0 : i32
    %c0_i32_0 = arith.constant 0 : i32
    %c0_i32_1 = arith.constant 0 : i32
    return %c0_i32, %c0_i32_0 : i32, i32
  }
  func.func @transform_1(%arg0: i32) -> (i32, i32) {
    %c0_i32 = arith.constant 0 : i32
    %c0_i32_0 = arith.constant 0 : i32
    %c0_i32_1 = arith.constant 0 : i32
    return %c0_i32, %c0_i32_0 : i32, i32
  }
  func.func @transform_2(%arg0: i32) -> (i32, i32) {
    %c0_i32 = arith.constant 0 : i32
    %c0_i32_0 = arith.constant 0 : i32
    return %arg0, %c0_i32 : i32, i32
  }
}

</mosaic_0001>

<llo_original>
// kernel: tpu_custom_call.1
$region0: #{tpu_custom_call.1}
  #allocation0 [shape = 'u32[]', space=smem, size = 0x4, offset = 0x4, fixed_abs, tag = 'smem constant byte address 0x4 - core index']
  #allocation1 [shape = 'u32[72,128]{1,0:T(1,128)}', space=vmem, size = 0x9000, scoped, tag = 'internal scratch']
  %s0 = inlined_call_operand.vmem [shape: f32[8,1], index: 0, kind: input, shape index: {}]
  %s1 = inlined_call_operand.vmem [shape: f32[1,128], index: 1, kind: input, shape index: {}]
  %s2 = inlined_call_operand.hbm [shape: f32[8,256], index: 2, kind: output, shape index: {}]
  %s3 = sld [smem:[#allocation0]]
  $region18: #{tpu_custom_call.1} parent=0
    _
  %s5 = ssub.s32 1, %s3
  %s6 = scalar_select 0, %s5, %s3
  $region1: #{tpu_custom_call.1} parent=0
    #allocation2 [shape = 'u8[8192]{0}', space=vmem, size = 0x2000, scoped, tag = 'output window, operand 0, single buffered']
    #allocation3 [shape = 's32[1]{0}', space=sflag, size = 0x4, scoped, tag = 'scoped memory for tpu_custom_call.1']
    %7 = vsyncpa [#allocation3], 0
    // Predicated region
    $region2: #{tpu_custom_call.1} parent=1 // pred_check
      _
    $region3: #{tpu_custom_call.1} parent=1 // pred_check_branch
      %9 = sbr.rel (0) target = $region5
    $region4: #{tpu_custom_call.1} parent=1 // pred_region
      _
    $region5: #{tpu_custom_call.1} parent=1 // pred_fallthru
      _
    // Predicated region
    $region6: #{tpu_custom_call.1} parent=1 // pred_check
      _
    $region7: #{tpu_custom_call.1} parent=1 // pred_check_branch
      %11 = sbr.rel (0) target = $region9
    $region8: #{tpu_custom_call.1} parent=1 // pred_region
      _
    $region9: #{tpu_custom_call.1} parent=1 // pred_fallthru
      _
    %s12 = smul.u32 0, 8
    %s13 = scalar_lea.vmem %s0, %s12
    %v14 = vld [vmem:[%s13] sm:$0xff]
    %v15 = vld [vmem:[%s1] sm:$0x1]
    %17 = vset.pattern.permute.xlu0 0
    %18 = vperm.xlu0 %17, %v14
    %v19 = vpop.permute.xlu0 %18
    %v22 = vperm.slane %v15, 0
    %v24 = vmul.f32 %v19, %v22
    %v25 = vmul.f32 %v24, 6.2831855
    %v26 = vand.u32 2147483647, %v25
    %vm27 = vcmp.le.f32.partialorder %v26, 0.7853982
    %vm28 = vcmp.lt.s32.totalorder %v25, 0
    %v29 = vand.u32 %v25, 2139095040
    %v30 = vshrl.u32 %v29, 23
    %v31 = vsub.s32 %v30, 127
    %v32 = vand.u32 2147483647, %v25
    %v33 = vand.u32 %v32, 8388607
    %v34 = vor.u32 %v33, 8388608
    %v35 = vsub.s32 0, %v34
    %v36 = vadd.s32 %v31, 1
    %vm37 = vcmp.gt.s32.totalorder %v36, 0
    %v38 = vsel %vm37, %v36, 0
    %v39 = vshrl.u32 %v38, 5
    %v40 = vand.u32 %v38, 31
    %v41 = vsub.s32 32, %v40
    %v42 = vshrl.u32 683565275, %v41
    %v43 = vshll.u32 683565275, %v40
    %v44 = vshrl.u32 2475754826, %v41
    %v45 = vor.u32 %v43, %v44
    %v46 = vshll.u32 2475754826, %v40
    %v47 = vshrl.u32 2131351028, %v41
    %v48 = vor.u32 %v46, %v47
    %v49 = vshll.u32 2131351028, %v40
    %v50 = vshrl.u32 2102212464, %v41
    %v51 = vor.u32 %v49, %v50
    %v52 = vshll.u32 2102212464, %v40
    %v53 = vshrl.u32 920167782, %v41
    %v54 = vor.u32 %v52, %v53
    %v55 = vshll.u32 920167782, %v40
    %v56 = vshrl.u32 1326507024, %v41
    %v57 = vor.u32 %v55, %v56
    %vm58 = vcmp.lt.s32.totalorder %v39, 1
    %vm59 = vcmp.lt.s32.totalorder %v39, 2
    %vm60 = vcmp.lt.s32.totalorder %v39, 3
    %vm61 = vcmp.lt.s32.totalorder %v39, 4
    %v62 = vsel %vm58, %v42, %v45
    %v63 = vsel %vm61, %v51, 2102212464
    %v64 = vsel %vm60, %v48, %v63
    %v65 = vsel %vm59, %v62, %v64
    %v66 = vsel %vm58, %v45, %v48
    %v67 = vsel %vm61, %v54, 920167782
    %v68 = vsel %vm60, %v51, %v67
    %v69 = vsel %vm59, %v66, %v68
    %v70 = vsel %vm58, %v48, %v51
    %v71 = vsel %vm61, %v57, 1326507024
    %v72 = vsel %vm60, %v54, %v71
    %v73 = vsel %vm59, %v70, %v72
    %v74 = vshll.u32 %v34, 8
    %v75 = vand.u32 %v74, 65535
    %v76 = vshrl.u32 %v74, 16
    %v77 = vand.u32 %v73, 65535
    %v78 = vshrl.u32 %v73, 16
    %v79 = vmul.u32 %v75, %v77
    %v80 = vmul.u32 %v75, %v78
    %v81 = vmul.u32 %v76, %v77
    %v82 = vmul.u32 %v76, %v78
    %v83 = vshll.u32 %v80, 16
    %v84 = vshrl.u32 %v80, 16
    %v85 = vshll.u32 %v81, 16
    %v86 = vshrl.u32 %v81, 16
    %vm87 = vc.u32 %v79, %v83
    %v88 = vsel %vm87, 1, 0
    %v89 = vadd.s32 %v79, %v83
    %v90 = vadd.s32 %v82, %v88
    %vm91 = vc.u32 %v89, %v85
    %v92 = vsel %vm91, 1, 0
    %v93 = vadd.s32 %v89, %v85
    %v94 = vadd.s32 %v90, %v92
    %v95 = vadd.s32 %v94, %v84
    %v96 = vadd.s32 %v95, %v86
    %v97 = vand.u32 %v74, 65535
    %v98 = vshrl.u32 %v74, 16
    %v99 = vand.u32 %v69, 65535
    %v100 = vshrl.u32 %v69, 16
    %v101 = vmul.u32 %v97, %v99
    %v102 = vmul.u32 %v97, %v100
    %v103 = vmul.u32 %v98, %v99
    %v104 = vmul.u32 %v98, %v100
    %v105 = vshll.u32 %v102, 16
    %v106 = vshrl.u32 %v102, 16
    %v107 = vshll.u32 %v103, 16
    %v108 = vshrl.u32 %v103, 16
    %vm109 = vc.u32 %v101, %v105
    %v110 = vsel %vm109, 1, 0
    %v111 = vadd.s32 %v101, %v105
    %v112 = vadd.s32 %v104, %v110
    %vm113 = vc.u32 %v111, %v107
    %v114 = vsel %vm113, 1, 0
    %v115 = vadd.s32 %v111, %v107
    %v116 = vadd.s32 %v112, %v114
    %v117 = vadd.s32 %v116, %v106
    %v118 = vadd.s32 %v117, %v108
    %v119 = vmul.u32 %v74, %v65
    %v120 = vadd.s32 %v96, %v115
    %vm121 = vc.u32 %v96, %v115
    %v122 = vadd.s32 %v118, 1
    %v123 = vsel %vm121, %v122, %v118
    %v124 = vadd.s32 %v119, %v123
    %v125 = vadd.s32 %v124, 536870912
    %v126 = vshrl.u32 %v125, 30
    %v127 = vshll.u32 %v126, 30
    %v128 = vsub.s32 %v124, %v127
    %vm129 = vcmp.lt.s32.totalorder %v128, 0
    %v130 = vsub.s32 0, %v128
    %v131 = vsel %vm129, %v130, %v128
    %v132 = vclz %v131
    %v133 = vsub.s32 %v132, 2
    %vm134 = vcmp.gt.s32.totalorder 0, %v133
    %v135 = vsel %vm134, 0, %v133
    %v136 = vsub.s32 32, %v135
    %v137 = vshll.u32 %v128, %v135
    %v138 = vshrl.u32 %v120, %v136
    %v139 = vor.u32 %v137, %v138
    %v140 = vsub.s32 4294967266, %v135
    %v141 = vadd.s32 %v140, 127
    %v142 = vshll.u32 %v141, 23
    %v143 = vor.u32 4788187, %v142
    %v144 = vand.u32 2147483647, %v143
    %v146 = vcvt.s32.f32 %v139
    %v147 = vmul.f32 %v146, %v144
    %v148 = vxor.u32 %v147, 2147483648
    %v149 = vsel %vm28, %v148, %v147
    %v150 = vsub.s32 4, %v126
    %v151 = vsel %vm28, %v150, %v126
    %v152 = vsel %vm27, %v25, %v149
    %v153 = vsel %vm27, 0, %v151
    %v154 = vmul.f32 %v152, %v152
    %v155 = vmul.f32 %v154, -0.001358992
    %v156 = vadd.f32 %v155, 0.041655596
    %v157 = vmul.f32 %v154, %v156
    %v158 = vadd.f32 %v157, -0.4999988
    %v159 = vmul.f32 %v154, %v158
    %v160 = vadd.f32 1.0, %v159
    %v161 = vmul.f32 %v152, %v152
    %v162 = vmul.f32 %v161, -0.00019511016
    %v163 = vadd.f32 %v162, 0.008332121
    %v164 = vmul.f32 %v161, %v163
    %v165 = vadd.f32 %v164, -0.16666654
    %v166 = vmul.f32 %v161, %v165
    %v167 = vadd.f32 %v166, 1.0
    %v168 = vmul.f32 %v167, %v152
    %vm169 = vweird.f32 %v25
    %v170 = vadd.s32 %v153, 3
    %v171 = vand.u32 %v170, 3
    %vm172 = vcmp.lt.s32.totalorder %v171, 2
    %vm173 = vcmp.eq.s32.totalorder %v171, 0
    %v174 = vxor.u32 %v168, 2147483648
    %v175 = vsel %vm173, %v160, %v174
    %vm176 = vcmp.eq.s32.totalorder %v171, 2
    %v177 = vxor.u32 %v160, 2147483648
    %v178 = vsel %vm176, %v177, %v168
    %v179 = vsel %vm172, %v175, %v178
    %v180 = vsel %vm169, nan, %v179
    %181 = vst [vmem:[#allocation2] sm:$0xff] %v180
    %v182 = vand.u32 2147483647, %v25
    %vm183 = vcmp.le.f32.partialorder %v182, 0.7853982
    %vm184 = vcmp.lt.s32.totalorder %v25, 0
    %v185 = vand.u32 %v25, 2139095040
    %v186 = vshrl.u32 %v185, 23
    %v187 = vsub.s32 %v186, 127
    %v188 = vand.u32 2147483647, %v25
    %v189 = vand.u32 %v188, 8388607
    %v190 = vor.u32 %v189, 8388608
    %v191 = vsub.s32 0, %v190
    %v192 = vadd.s32 %v187, 1
    %vm193 = vcmp.gt.s32.totalorder %v192, 0
    %v194 = vsel %vm193, %v192, 0
    %v195 = vshrl.u32 %v194, 5
    %v196 = vand.u32 %v194, 31
    %v197 = vsub.s32 32, %v196
    %v198 = vshrl.u32 683565275, %v197
    %v199 = vshll.u32 683565275, %v196
    %v200 = vshrl.u32 2475754826, %v197
    %v201 = vor.u32 %v199, %v200
    %v202 = vshll.u32 2475754826, %v196
    %v203 = vshrl.u32 2131351028, %v197
    %v204 = vor.u32 %v202, %v203
    %v205 = vshll.u32 2131351028, %v196
    %v206 = vshrl.u32 2102212464, %v197
    %v207 = vor.u32 %v205, %v206
    %v208 = vshll.u32 2102212464, %v196
    %v209 = vshrl.u32 920167782, %v197
    %v210 = vor.u32 %v208, %v209
    %v211 = vshll.u32 920167782, %v196
    %v212 = vshrl.u32 1326507024, %v197
    %v213 = vor.u32 %v211, %v212
    %vm214 = vcmp.lt.s32.totalorder %v195, 1
    %vm215 = vcmp.lt.s32.totalorder %v195, 2
    %vm216 = vcmp.lt.s32.totalorder %v195, 3
    %vm217 = vcmp.lt.s32.totalorder %v195, 4
    %v218 = vsel %vm214, %v198, %v201
    %v219 = vsel %vm217, %v207, 2102212464
    %v220 = vsel %vm216, %v204, %v219
    %v221 = vsel %vm215, %v218, %v220
    %v222 = vsel %vm214, %v201, %v204
    %v223 = vsel %vm217, %v210, 920167782
    %v224 = vsel %vm216, %v207, %v223
    %v225 = vsel %vm215, %v222, %v224
    %v226 = vsel %vm214, %v204, %v207
    %v227 = vsel %vm217, %v213, 1326507024
    %v228 = vsel %vm216, %v210, %v227
    %v229 = vsel %vm215, %v226, %v228
    %v230 = vshll.u32 %v190, 8
    %v231 = vand.u32 %v230, 65535
    %v232 = vshrl.u32 %v230, 16
    %v233 = vand.u32 %v229, 65535
    %v234 = vshrl.u32 %v229, 16
    %v235 = vmul.u32 %v231, %v233
    %v236 = vmul.u32 %v231, %v234
    %v237 = vmul.u32 %v232, %v233
    %v238 = vmul.u32 %v232, %v234
    %v239 = vshll.u32 %v236, 16
    %v240 = vshrl.u32 %v236, 16
    %v241 = vshll.u32 %v237, 16
    %v242 = vshrl.u32 %v237, 16
    %vm243 = vc.u32 %v235, %v239
    %v244 = vsel %vm243, 1, 0
    %v245 = vadd.s32 %v235, %v239
    %v246 = vadd.s32 %v238, %v244
    %vm247 = vc.u32 %v245, %v241
    %v248 = vsel %vm247, 1, 0
    %v249 = vadd.s32 %v245, %v241
    %v250 = vadd.s32 %v246, %v248
    %v251 = vadd.s32 %v250, %v240
    %v252 = vadd.s32 %v251, %v242
    %v253 = vand.u32 %v230, 65535
    %v254 = vshrl.u32 %v230, 16
    %v255 = vand.u32 %v225, 65535
    %v256 = vshrl.u32 %v225, 16
    %v257 = vmul.u32 %v253, %v255
    %v258 = vmul.u32 %v253, %v256
    %v259 = vmul.u32 %v254, %v255
    %v260 = vmul.u32 %v254, %v256
    %v261 = vshll.u32 %v258, 16
    %v262 = vshrl.u32 %v258, 16
    %v263 = vshll.u32 %v259, 16
    %v264 = vshrl.u32 %v259, 16
    %vm265 = vc.u32 %v257, %v261
    %v266 = vsel %vm265, 1, 0
    %v267 = vadd.s32 %v257, %v261
    %v268 = vadd.s32 %v260, %v266
    %vm269 = vc.u32 %v267, %v263
    %v270 = vsel %vm269, 1, 0
    %v271 = vadd.s32 %v267, %v263
    %v272 = vadd.s32 %v268, %v270
    %v273 = vadd.s32 %v272, %v262
    %v274 = vadd.s32 %v273, %v264
    %v275 = vmul.u32 %v230, %v221
    %v276 = vadd.s32 %v252, %v271
    %vm277 = vc.u32 %v252, %v271
    %v278 = vadd.s32 %v274, 1
    %v279 = vsel %vm277, %v278, %v274
    %v280 = vadd.s32 %v275, %v279
    %v281 = vadd.s32 %v280, 536870912
    %v282 = vshrl.u32 %v281, 30
    %v283 = vshll.u32 %v282, 30
    %v284 = vsub.s32 %v280, %v283
    %vm285 = vcmp.lt.s32.totalorder %v284, 0
    %v286 = vsub.s32 0, %v284
    %v287 = vsel %vm285, %v286, %v284
    %v288 = vclz %v287
    %v289 = vsub.s32 %v288, 2
    %vm290 = vcmp.gt.s32.totalorder 0, %v289
    %v291 = vsel %vm290, 0, %v289
    %v292 = vsub.s32 32, %v291
    %v293 = vshll.u32 %v284, %v291
    %v294 = vshrl.u32 %v276, %v292
    %v295 = vor.u32 %v293, %v294
    %v296 = vsub.s32 4294967266, %v291
    %v297 = vadd.s32 %v296, 127
    %v298 = vshll.u32 %v297, 23
    %v299 = vor.u32 4788187, %v298
    %v300 = vand.u32 2147483647, %v299
    %v302 = vcvt.s32.f32 %v295
    %v303 = vmul.f32 %v302, %v300
    %v304 = vxor.u32 %v303, 2147483648
    %v305 = vsel %vm184, %v304, %v303
    %v306 = vsub.s32 4, %v282
    %v307 = vsel %vm184, %v306, %v282
    %v308 = vsel %vm183, %v25, %v305
    %v309 = vsel %vm183, 0, %v307
    %v310 = vmul.f32 %v308, %v308
    %v311 = vmul.f32 %v310, -0.001358992
    %v312 = vadd.f32 %v311, 0.041655596
    %v313 = vmul.f32 %v310, %v312
    %v314 = vadd.f32 %v313, -0.4999988
    %v315 = vmul.f32 %v310, %v314
    %v316 = vadd.f32 1.0, %v315
    %v317 = vmul.f32 %v308, %v308
    %v318 = vmul.f32 %v317, -0.00019511016
    %v319 = vadd.f32 %v318, 0.008332121
    %v320 = vmul.f32 %v317, %v319
    %v321 = vadd.f32 %v320, -0.16666654
    %v322 = vmul.f32 %v317, %v321
    %v323 = vadd.f32 %v322, 1.0
    %v324 = vmul.f32 %v323, %v308
    %vm325 = vweird.f32 %v25
    %v326 = vand.u32 %v309, 3
    %vm327 = vcmp.lt.s32.totalorder %v326, 2
    %vm328 = vcmp.eq.s32.totalorder %v326, 0
    %v329 = vxor.u32 %v324, 2147483648
    %v330 = vsel %vm328, %v316, %v329
    %vm331 = vcmp.eq.s32.totalorder %v326, 2
    %v332 = vxor.u32 %v316, 2147483648
    %v333 = vsel %vm331, %v332, %v324
    %v334 = vsel %vm327, %v330, %v333
    %v335 = vsel %vm325, nan, %v334
    %336 = vst [vmem:[#allocation2 + $0x8] sm:$0xff] %v335
    // Predicated region
    $region10: #{tpu_custom_call.1} parent=1 // pred_check
      _
    $region11: #{tpu_custom_call.1} parent=1 // pred_check_branch
      %338 = sbr.rel (0) target = $region13
    $region12: #{tpu_custom_call.1} parent=1 // pred_region
      %340 = vsyncadd [#allocation3], 0
      %s342 = sshll.u32 [#allocation2], 4
      %s343 = int_to_ptr.vmem [resolvable:$true] %s342
      %s344 = sshll.u32 %s2, 4
      %s345 = int_to_ptr.hbm [resolvable:$true] %s344
      %347 = dma.vmem_to_hbm [thread:$0]  %s343, 256, %s345, [#allocation3]
    $region13: #{tpu_custom_call.1} parent=1 // pred_fallthru
      _
    // Predicated region
    $region14: #{tpu_custom_call.1} parent=1 // pred_check
      _
    $region15: #{tpu_custom_call.1} parent=1 // pred_check_branch
      %349 = sbr.rel (0) target = $region17
    $region16: #{tpu_custom_call.1} parent=1 // pred_region
      %351 = dma.done [#allocation3], 256
    $region17: #{tpu_custom_call.1} parent=1 // pred_fallthru
      _
    %352 = vsyncpa [#allocation3], 1

</llo_original>
